<compile_context>
chip_gen: v7x
topology: tpu7x:2x2x1
jax: 0.10.0
libtpu: 0.0.40
codegen_flags: <defaults>
</compile_context>

<pallas_src>
import functools
import math

import numpy as np
import jax
import jax.numpy as jnp
from jax.experimental import pallas as pl
from jax.experimental.pallas import tpu as pltpu


def _add_pe_kernel(x_ref, p_ref, o_ref):
    # x_ref / o_ref: (t_b, t_l) in xs dtype; p_ref: (1, t_l) float32.
    # Accumulate in f32 so bf16/fp8 inputs keep the table's ~1e-3 accuracy.
    acc = x_ref[...].astype(jnp.float32) + p_ref[...]
    o_ref[...] = acc.astype(o_ref.dtype)


@functools.lru_cache(maxsize=None)
def _position_table_host(S, D):
    """Vectorized float64 port of the PyTorch loop building P (S, D)."""
    pos = np.arange(S, dtype=np.float64)[:, None]                 # (S, 1)
    col = np.arange(D)                                            # (D,)
    # exponent 2*i for column c: c if even, c-1 if odd.  The odd-D "extra"
    # column D-1 uses exponent D-1 == 2*((D-1)//2), so it is covered too.
    two_i = (col - (col % 2)).astype(np.float64)
    denom = np.power(10000.0, two_i) / float(D)                   # (D,)
    angle = pos / denom                                           # (S, D)
    tbl = np.where(col % 2 == 0, np.sin(angle), np.cos(angle))    # f64 (S, D)
    return np.asarray(tbl, dtype=np.float32).reshape(1, S * D)


@functools.lru_cache(maxsize=None)
def _position_table_device(S, D):
    """Device-resident f32 table, cached so repeat calls skip the H2D copy."""
    return jnp.asarray(_position_table_host(S, D))


def _per_block_byte_budget():
    """Chip-aware per-x-block byte budget (bigger HBM BW -> bigger blocks)."""
    try:
        kind = jax.devices()[0].device_kind.lower()
    except Exception:
        kind = ""
    if "v7" in kind:
        return 8 << 20   # 3.2 TB/s: amortize the ~0.35us step cost; 64 MiB VMEM
    if "v6" in kind:
        return 4 << 20   # double-buffered in+out fits 32 MiB scoped default
    if "v5" in kind:
        return 2 << 20   # tightest scoped default (16 MiB)
    return 4 << 20


def _sublane_multiple(dtype):
    """Packed sublane count: 8 for 32-bit, 16 for bf16/fp16, 32 for 8-bit."""
    itemsize = np.dtype(dtype).itemsize
    return max(8, 32 // max(1, itemsize))


def _choose_tiles(B, L, dtype, budget_bytes):
    """Pick (t_b, t_l) so one x block is <= budget_bytes and block shapes stay
    legal ((8,128)-divisible or equal to the full array dim).  The batch tile
    is fixed first and the lane tile derived from the remaining budget, so the
    product never blows past the budget."""
    itemsize = np.dtype(dtype).itemsize
    budget = max(128, budget_bytes // itemsize)       # elements per x block
    sub = _sublane_multiple(dtype)

    if B * L <= budget:                                # whole array, one block
        return B, L

    # Lane tile: full row if it fits, else a lane-dense multiple of 128.
    if L <= budget:
        t_l = L
    else:
        t_l = max(128, (budget // 128) * 128)

    rows = budget // t_l
    if rows >= B:
        t_b = B                                        # full batch dim: legal
    elif rows >= sub:
        t_b = (rows // sub) * sub                      # sublane-packed slice
    else:
        # A single row nearly fills the budget: fix a minimal legal batch tile
        # and shrink the lane tile instead of exceeding the budget.
        t_b = min(B, sub)
        t_l_cap = (budget // t_b // 128) * 128
        t_l = L if t_l_cap >= L else max(128, t_l_cap)
    return t_b, t_l


def position_encoder(xs):
    """xs: (B, S, D) float -> (B, S, D) same dtype, xs + positional table."""
    B, S, D = xs.shape
    L = S * D
    p = _position_table_device(S, D)                   # (1, L) float32
    x2 = xs.reshape(B, L)

    budget_bytes = _per_block_byte_budget()
    t_b, t_l = _choose_tiles(B, L, xs.dtype, budget_bytes)
    n_b = pl.cdiv(B, t_b)
    n_l = pl.cdiv(L, t_l)

    # Put the larger-extent axis first so the (megacore-sharded) leading
    # parallel axis has extent >= 2 whenever there is work to split.  P's
    # index_map ignores the batch index in both orderings.
    if n_l >= n_b:
        grid = (n_l, n_b)
        x_spec = pl.BlockSpec((t_b, t_l), lambda l, b: (b, l))
        p_spec = pl.BlockSpec((1, t_l), lambda l, b: (0, l))
        o_spec = pl.BlockSpec((t_b, t_l), lambda l, b: (b, l))
    else:
        grid = (n_b, n_l)
        x_spec = pl.BlockSpec((t_b, t_l), lambda b, l: (b, l))
        p_spec = pl.BlockSpec((1, t_l), lambda b, l: (0, l))
        o_spec = pl.BlockSpec((t_b, t_l), lambda b, l: (b, l))

    # Scoped-VMEM limit sized to what double-buffered in+out actually needs.
    block_bytes = t_b * t_l * np.dtype(xs.dtype).itemsize
    p_bytes = t_l * 4
    needed = 4 * block_bytes + 2 * p_bytes             # 2-deep x in + out, + P
    vmem_limit = int(min(48 << 20, max(needed + (2 << 20), 16 << 20)))

    out = pl.pallas_call(
        _add_pe_kernel,
        out_shape=jax.ShapeDtypeStruct((B, L), xs.dtype),
        grid_spec=pl.GridSpec(
            grid=grid,
            in_specs=[x_spec, p_spec],
            out_specs=o_spec,
        ),
        compiler_params=pltpu.CompilerParams(
            dimension_semantics=("parallel", "parallel"),
            vmem_limit_bytes=vmem_limit),
    )(x2, p)
    return out.reshape(B, S, D)


def _reference(xs):
    """Literal float64 port of the PyTorch forward, in numpy."""
    xs64 = np.asarray(xs, dtype=np.float64)
    B, S, D = xs64.shape
    P = np.zeros((S, D), dtype=np.float64)
    for pos in range(S):
        for i in range(D // 2):
            P[pos][2 * i] = math.sin(pos / (10000 ** (2 * i) / D))
            P[pos][2 * i + 1] = math.cos(pos / (10000 ** (2 * i) / D))
        if D % 2 != 0:
            P[pos][D - 1] = math.sin(pos / (10000 ** (D - 1) / D))
    return xs64 + P[None]


if __name__ == "__main__":
    key = jax.random.PRNGKey(0)

    # Primary check: shape implied by the module (batch=2, seq=8, d_model=32).
    B, S, D = 2, 8, 32
    xs = jax.random.normal(key, (B, S, D), dtype=jnp.float32)
    y = jax.block_until_ready(position_encoder(xs))
    np.testing.assert_allclose(np.asarray(y, dtype=np.float64), _reference(xs),
                               rtol=1e-3, atol=1e-3)

    # Secondary check: odd d_model exercises the "extra" sin column D-1.
    xs_odd = jax.random.normal(jax.random.PRNGKey(1), (2, 8, 33),
                               dtype=jnp.float32)
    y_odd = jax.block_until_ready(position_encoder(xs_odd))
    np.testing.assert_allclose(np.asarray(y_odd, dtype=np.float64),
                               _reference(xs_odd), rtol=1e-3, atol=1e-3)

    # Third check: bf16 input exercises the f32-accumulation path and the
    # dtype-aware tile chooser.
    xs_bf = jax.random.normal(jax.random.PRNGKey(2), (2, 8, 32),
                              dtype=jnp.bfloat16)
    y_bf = jax.block_until_ready(position_encoder(xs_bf))
    np.testing.assert_allclose(np.asarray(y_bf, dtype=np.float64),
                               _reference(xs_bf), rtol=2e-2, atol=2e-2)

    print("KERNEL_OK")
</pallas_src>

<mosaic_0001>
module attributes {stable_mosaic.version = 11 : i64} {
  func.func @_add_pe_kernel(%arg0: i32, %arg1: i32, %arg2: memref<2x256xf32, #tpu.memory_space<vmem>>, %arg3: memref<1x256xf32, #tpu.memory_space<vmem>>, %arg4: memref<2x256xf32, #tpu.memory_space<vmem>>) attributes {dimension_semantics = [#tpu.dimension_semantics<parallel>, #tpu.dimension_semantics<parallel>], iteration_bounds = array<i64: 1, 1>, scalar_prefetch = 0 : i64, scratch_operands = 0 : i64, tpu.core_type = #tpu.core_type<tc>, window_params = [{transform_indices = @transform_0, window_bounds = array<i64: 2, 256>}, {transform_indices = @transform_1, window_bounds = array<i64: 1, 256>}, {transform_indices = @transform_2, window_bounds = array<i64: 2, 256>}]} {
    %c0 = arith.constant 0 : index
    %c0_0 = arith.constant 0 : index
    %0 = vector.load %arg2[%c0, %c0_0] : memref<2x256xf32, #tpu.memory_space<vmem>>, vector<2x256xf32>
    %c0_1 = arith.constant 0 : index
    %c0_2 = arith.constant 0 : index
    %1 = vector.load %arg3[%c0_1, %c0_2] : memref<1x256xf32, #tpu.memory_space<vmem>>, vector<1x256xf32>
    %2 = vector.broadcast %1 : vector<1x256xf32> to vector<2x256xf32>
    %3 = arith.addf %0, %2 : vector<2x256xf32>
    %c0_3 = arith.constant 0 : index
    %c0_4 = arith.constant 0 : index
    %4 = vector.load %arg4[%c0_3, %c0_4] : memref<2x256xf32, #tpu.memory_space<vmem>>, vector<2x256xf32>
    tpu.vector_store %arg4[%c0_3, %c0_4], %3 {strides = array<i32>} : memref<2x256xf32, #tpu.memory_space<vmem>>, vector<2x256xf32>,
    return
  }
  func.func @transform_0(%arg0: i32, %arg1: i32) -> (i32, i32) {
    %c0_i32 = arith.constant 0 : i32
    return %arg1, %arg0 : i32, i32
  }
  func.func @transform_1(%arg0: i32, %arg1: i32) -> (i32, i32) {
    %c0_i32 = arith.constant 0 : i32
    %c0_i32_0 = arith.constant 0 : i32
    return %c0_i32, %arg0 : i32, i32
  }
  func.func @transform_2(%arg0: i32, %arg1: i32) -> (i32, i32) {
    %c0_i32 = arith.constant 0 : i32
    return %arg1, %arg0 : i32, i32
  }
}

</mosaic_0001>

<llo_original>
// kernel: tpu_custom_call.1
$region0: #{tpu_custom_call.1}
  #allocation0 [shape = 'u32[]', space=smem, size = 0x4, offset = 0x4, fixed_abs, tag = 'smem constant byte address 0x4 - core index']
  #allocation1 [shape = 'u32[144,128]{1,0:T(1,128)}', space=vmem, size = 0x12000, scoped, tag = 'internal scratch']
  %s0 = inlined_call_operand.hbm [shape: f32[2,256], index: 0, kind: input, shape index: {}]
  %s1 = inlined_call_operand.vmem [shape: f32[1,256], index: 1, kind: input, shape index: {}]
  %s2 = inlined_call_operand.hbm [shape: f32[2,256], index: 2, kind: output, shape index: {}]
  %s3 = sld [smem:[#allocation0]]
  $region22: #{tpu_custom_call.1} parent=0
    _
  %s5 = ssub.s32 1, %s3
  %s6 = scalar_select 0, %s5, %s3
  $region1: #{tpu_custom_call.1} parent=0
    #allocation2 [shape = 'u8[2048]{0}', space=vmem, size = 0x800, scoped, tag = 'input window, operand 0, single buffered']
    #allocation3 [shape = 's32[1]{0}', space=sflag, size = 0x4, scoped, tag = 'scoped memory for tpu_custom_call.1']
    #allocation4 [shape = 's32[1]{0}', space=sflag, size = 0x4, scoped, tag = 'scoped memory for tpu_custom_call.1']
    #allocation5 [shape = 'u8[2048]{0}', space=vmem, size = 0x800, scoped, tag = 'output window, operand 0, single buffered']
    %7 = vsyncpa [#allocation3], 0
    %8 = vsyncpa [#allocation4], 0
    // Predicated region
    $region2: #{tpu_custom_call.1} parent=1 // pred_check
      _
    $region3: #{tpu_custom_call.1} parent=1 // pred_check_branch
      %10 = sbr.rel (0) target = $region5
    $region4: #{tpu_custom_call.1} parent=1 // pred_region
      %s12 = ssub.s32 64, 64
      %13 = vsyncadd [#allocation3], %s12
      %s15 = sshll.u32 [#allocation2], 4
      %s16 = int_to_ptr.vmem [resolvable:$true] %s15
      %18 = dma.hbm_to_vmem [thread:$0]  %s0, 64, %s16, [#allocation3]
    $region5: #{tpu_custom_call.1} parent=1 // pred_fallthru
      _
    // Predicated region
    $region6: #{tpu_custom_call.1} parent=1 // pred_check
      _
    $region7: #{tpu_custom_call.1} parent=1 // pred_check_branch
      %20 = sbr.rel (0) target = $region9
    $region8: #{tpu_custom_call.1} parent=1 // pred_region
      _
    $region9: #{tpu_custom_call.1} parent=1 // pred_fallthru
      _
    // Predicated region
    $region10: #{tpu_custom_call.1} parent=1 // pred_check
      _
    $region11: #{tpu_custom_call.1} parent=1 // pred_check_branch
      %22 = sbr.rel (0) target = $region13
    $region12: #{tpu_custom_call.1} parent=1 // pred_region
      %23 = dma.done [#allocation3], 64
    $region13: #{tpu_custom_call.1} parent=1 // pred_fallthru
      _
    %v24 = vld [vmem:[#allocation2] sm:$0xf]
    %v25 = vld [vmem:[%s1] sm:$0x3]
    %v27 = vlaneseq
    %v28 = vshrl.u32 %v27, 7
    %v29 = vsub.s32 0, %v28
    %v30 = vrot.slane %v25, %v29
    %v31 = vlaneseq
    %v32 = vshrl.u32 %v31, 7
    %v33 = vsub.s32 1, %v32
    %v34 = vrot.slane %v25, %v33
    %v35 = vcombine.low %v30, %v34
    %v37 = vunpack.c.l.s4 1983009808
    %v38 = vunpack.c.0.s8 %v37
    %v39 = vlaneseq
    %v40 = vshrl.u32 %v39, 7
    %v41 = vsub.s32 %v38, %v40
    %v42 = vrot.slane %v35, %v41
    %v44 = vadd.f32 %v24, %v42
    %45 = vst [vmem:[#allocation5] sm:$0xf] %v44
    // Predicated region
    $region14: #{tpu_custom_call.1} parent=1 // pred_check
      _
    $region15: #{tpu_custom_call.1} parent=1 // pred_check_branch
      %47 = sbr.rel (0) target = $region17
    $region16: #{tpu_custom_call.1} parent=1 // pred_region
      %s49 = ssub.s32 64, 64
      %50 = vsyncadd [#allocation4], %s49
      %s52 = sshll.u32 [#allocation5], 4
      %s53 = int_to_ptr.vmem [resolvable:$true] %s52
      %55 = dma.vmem_to_hbm [thread:$0]  %s53, 64, %s2, [#allocation4]
    $region17: #{tpu_custom_call.1} parent=1 // pred_fallthru
      _
    // Predicated region
    $region18: #{tpu_custom_call.1} parent=1 // pred_check
      _
    $region19: #{tpu_custom_call.1} parent=1 // pred_check_branch
      %57 = sbr.rel (0) target = $region21
    $region20: #{tpu_custom_call.1} parent=1 // pred_region
      %58 = dma.done [#allocation4], 64
    $region21: #{tpu_custom_call.1} parent=1 // pred_fallthru
      _
    %59 = vsyncpa [#allocation3], 1
    %60 = vsyncpa [#allocation4], 1

</llo_original>
